<compile_context>
chip_gen: v7x
topology: tpu7x:2x2x1
jax: 0.10.0
libtpu: 0.0.40
codegen_flags: <defaults>
</compile_context>

<pallas_src>
import jax
import jax.numpy as jnp
import numpy as np
from jax.experimental import pallas as pl
from jax.experimental.pallas import tpu as pltpu

# Problem constants (from the PyTorch module)
C_IN, C_OUT = 5, 1
KH, KW = 2, 3
SH, SW = 2, 1
LEAK = 0.165
WP = 128          # lane-dense working width inside the kernel


def _convt_leaky_kernel(w_ref, b_ref, x_ref, y_ref):
    # w_ref: SMEM (C_IN*KH*KW,)  flattened weight[ci, 0, kh, kw]
    # b_ref: SMEM (1,)
    # x_ref: VMEM (1, C_IN, H, W)   raw input block (W = 59)
    # y_ref: VMEM (1, KH, H, WP)    row-parity-major, lane-dense output
    h = x_ref.shape[2]
    w = x_ref.shape[3]
    wp = y_ref.shape[3]
    bias = b_ref[0]

    x = x_ref[0]                                     # (C_IN, H, W)
    # Zero-extend the lane axis to WP once (per channel, 2-D concat); all
    # later rolls then wrap zeros and the right edge is correctly zero-filled.
    zpad = jnp.zeros((h, wp - w), jnp.float32)
    xp = [jnp.concatenate([x[ci], zpad], axis=1) for ci in range(C_IN)]

    for kh in range(KH):
        acc = None
        for kw in range(KW):
            # per-tap channel contraction (unrolled, VPU, scalar-broadcast w)
            p = xp[0] * w_ref[kh * KW + kw]
            for ci in range(1, C_IN):
                p = p + xp[ci] * w_ref[ci * KH * KW + kh * KW + kw]
            # shift right by kw along lanes; wrapped lanes carry zeros (pad),
            # so no mask is required.
            shifted = pltpu.roll(p, shift=kw, axis=1) if kw else p
            acc = shifted if acc is None else acc + shifted
        z = acc + bias
        # fused "leaky" select: where(z > 0, z, 0.165*z)
        y_ref[0, kh] = jnp.where(z > 0.0, z, z * LEAK)


def convt_leaky(x, weight, bias):
    """x: (N, C_IN, H, W) f32; weight: (C_IN, 1, KH, KW); bias: (1,).
    Returns (N, 1, (H-1)*SH + KH, (W-1)*SW + KW) float32."""
    n, c, h, w = x.shape
    assert c == C_IN
    h_out = (h - 1) * SH + KH
    w_out = (w - 1) * SW + KW
    assert h_out == h * KH       # stride_h == KH: row-parity interleave valid
    assert w_out <= WP

    w_flat = weight[:, 0, :, :].reshape(-1).astype(jnp.float32)  # (C_IN*KH*KW,)
    b = bias.astype(jnp.float32).reshape(1)

    y = pl.pallas_call(
        _convt_leaky_kernel,
        out_shape=jax.ShapeDtypeStruct((n, KH, h, WP), jnp.float32),
        grid=(n,),
        in_specs=[
            pl.BlockSpec(memory_space=pltpu.MemorySpace.SMEM),   # weights
            pl.BlockSpec(memory_space=pltpu.MemorySpace.SMEM),   # bias
            pl.BlockSpec((1, c, h, w), lambda i: (i, 0, 0, 0)),  # raw input
        ],
        out_specs=pl.BlockSpec((1, KH, h, WP), lambda i: (i, 0, 0, 0)),
        compiler_params=pltpu.CompilerParams(
            dimension_semantics=("parallel",)),
    )(w_flat, b, x.astype(jnp.float32))

    # single fused epilogue: interleave kh into rows (out[n,0,2*ih+kh,:]) and
    # trim the lane padding 128 -> w_out.
    y = jnp.transpose(y, (0, 2, 1, 3)).reshape(n, 1, h_out, WP)
    return y[:, :, :, :w_out]


def _reference(x, weight, bias):
    x = np.asarray(x, dtype=np.float64)
    wgt = np.asarray(weight, dtype=np.float64)
    b = np.asarray(bias, dtype=np.float64)
    n, c, h, w = x.shape
    h_out = (h - 1) * SH + KH
    w_out = (w - 1) * SW + KW
    out = np.zeros((n, 1, h_out, w_out), dtype=np.float64)
    for kh in range(KH):
        for kw in range(KW):
            contrib = np.einsum("nchw,c->nhw", x, wgt[:, 0, kh, kw])
            out[:, 0, kh::SH, kw:kw + w] += contrib
    out += b[0]
    return np.where(out > 0.0, out, out * LEAK)


if __name__ == "__main__":
    key = jax.random.PRNGKey(0)
    kx, kw_, kb = jax.random.split(key, 3)
    N, H, W = 2, 67, 59
    x = jax.random.normal(kx, (N, C_IN, H, W), dtype=jnp.float32)
    # deterministic in-script parameter init (no checkpoint load)
    weight = jax.random.normal(kw_, (C_IN, C_OUT, KH, KW), dtype=jnp.float32) * 0.3
    bias = jax.random.normal(kb, (C_OUT,), dtype=jnp.float32) * 0.1

    out = convt_leaky(x, weight, bias)
    out = jax.block_until_ready(out)

    ref = _reference(x, weight, bias)
    assert out.shape == (N, 1, (H - 1) * SH + KH, (W - 1) * SW + KW)
    np.testing.assert_allclose(np.asarray(out), ref.astype(np.float32),
                               rtol=1e-4, atol=1e-4)
    print("KERNEL_OK")
</pallas_src>

<mosaic_0001>
module attributes {stable_mosaic.version = 11 : i64} {
  func.func @_convt_leaky_kernel(%arg0: i32, %arg1: memref<30xf32, #tpu.memory_space<smem>>, %arg2: memref<1xf32, #tpu.memory_space<smem>>, %arg3: memref<1x5x67x59xf32, #tpu.memory_space<vmem>>, %arg4: memref<1x2x67x128xf32, #tpu.memory_space<vmem>>) attributes {dimension_semantics = [#tpu.dimension_semantics<parallel>], iteration_bounds = array<i64: 2>, scalar_prefetch = 0 : i64, scratch_operands = 0 : i64, tpu.core_type = #tpu.core_type<tc>, window_params = [{transform_indices = @transform_0, window_bounds = array<i64: 30>}, {transform_indices = @transform_1, window_bounds = array<i64: 1>}, {transform_indices = @transform_2, window_bounds = array<i64: 1, 5, 67, 59>}, {transform_indices = @transform_3, window_bounds = array<i64: 1, 2, 67, 128>}]} {
    %c0 = arith.constant 0 : index
    %0 = memref.load %arg2[%c0] : memref<1xf32, #tpu.memory_space<smem>>
    %c0_0 = arith.constant 0 : index
    %c0_1 = arith.constant 0 : index
    %c0_2 = arith.constant 0 : index
    %c0_3 = arith.constant 0 : index
    %1 = vector.load %arg3[%c0_0, %c0_1, %c0_2, %c0_3] : memref<1x5x67x59xf32, #tpu.memory_space<vmem>>, vector<1x5x67x59xf32>
    %2 = vector.shape_cast %1 : vector<1x5x67x59xf32> to vector<5x67x59xf32>
    %cst = arith.constant 0.000000e+00 : f32
    %3 = vector.broadcast %cst : f32 to vector<67x69xf32>
    %4 = vector.extract_strided_slice %2 {offsets = [0, 0, 0], sizes = [1, 67, 59], strides = [1, 1, 1]} : vector<5x67x59xf32> to vector<1x67x59xf32>
    %5 = vector.shape_cast %4 : vector<1x67x59xf32> to vector<67x59xf32>
    %6 = tpu.concatenate %5, %3 in 1 : vector<67x59xf32>, vector<67x69xf32> -> vector<67x128xf32>
    %7 = vector.extract_strided_slice %2 {offsets = [1, 0, 0], sizes = [1, 67, 59], strides = [1, 1, 1]} : vector<5x67x59xf32> to vector<1x67x59xf32>
    %8 = vector.shape_cast %7 : vector<1x67x59xf32> to vector<67x59xf32>
    %9 = tpu.concatenate %8, %3 in 1 : vector<67x59xf32>, vector<67x69xf32> -> vector<67x128xf32>
    %10 = vector.extract_strided_slice %2 {offsets = [2, 0, 0], sizes = [1, 67, 59], strides = [1, 1, 1]} : vector<5x67x59xf32> to vector<1x67x59xf32>
    %11 = vector.shape_cast %10 : vector<1x67x59xf32> to vector<67x59xf32>
    %12 = tpu.concatenate %11, %3 in 1 : vector<67x59xf32>, vector<67x69xf32> -> vector<67x128xf32>
    %13 = vector.extract_strided_slice %2 {offsets = [3, 0, 0], sizes = [1, 67, 59], strides = [1, 1, 1]} : vector<5x67x59xf32> to vector<1x67x59xf32>
    %14 = vector.shape_cast %13 : vector<1x67x59xf32> to vector<67x59xf32>
    %15 = tpu.concatenate %14, %3 in 1 : vector<67x59xf32>, vector<67x69xf32> -> vector<67x128xf32>
    %16 = vector.extract_strided_slice %2 {offsets = [4, 0, 0], sizes = [1, 67, 59], strides = [1, 1, 1]} : vector<5x67x59xf32> to vector<1x67x59xf32>
    %17 = vector.shape_cast %16 : vector<1x67x59xf32> to vector<67x59xf32>
    %18 = tpu.concatenate %17, %3 in 1 : vector<67x59xf32>, vector<67x69xf32> -> vector<67x128xf32>
    %c0_4 = arith.constant 0 : index
    %19 = memref.load %arg1[%c0_4] : memref<30xf32, #tpu.memory_space<smem>>
    %20 = vector.broadcast %19 : f32 to vector<67x128xf32>
    %21 = arith.mulf %6, %20 : vector<67x128xf32>
    %c6 = arith.constant 6 : index
    %22 = memref.load %arg1[%c6] : memref<30xf32, #tpu.memory_space<smem>>
    %23 = vector.broadcast %22 : f32 to vector<67x128xf32>
    %24 = arith.mulf %9, %23 : vector<67x128xf32>
    %25 = arith.addf %21, %24 : vector<67x128xf32>
    %c12 = arith.constant 12 : index
    %26 = memref.load %arg1[%c12] : memref<30xf32, #tpu.memory_space<smem>>
    %27 = vector.broadcast %26 : f32 to vector<67x128xf32>
    %28 = arith.mulf %12, %27 : vector<67x128xf32>
    %29 = arith.addf %25, %28 : vector<67x128xf32>
    %c18 = arith.constant 18 : index
    %30 = memref.load %arg1[%c18] : memref<30xf32, #tpu.memory_space<smem>>
    %31 = vector.broadcast %30 : f32 to vector<67x128xf32>
    %32 = arith.mulf %15, %31 : vector<67x128xf32>
    %33 = arith.addf %29, %32 : vector<67x128xf32>
    %c24 = arith.constant 24 : index
    %34 = memref.load %arg1[%c24] : memref<30xf32, #tpu.memory_space<smem>>
    %35 = vector.broadcast %34 : f32 to vector<67x128xf32>
    %36 = arith.mulf %18, %35 : vector<67x128xf32>
    %37 = arith.addf %33, %36 : vector<67x128xf32>
    %c1 = arith.constant 1 : index
    %38 = memref.load %arg1[%c1] : memref<30xf32, #tpu.memory_space<smem>>
    %39 = vector.broadcast %38 : f32 to vector<67x128xf32>
    %40 = arith.mulf %6, %39 : vector<67x128xf32>
    %c7 = arith.constant 7 : index
    %41 = memref.load %arg1[%c7] : memref<30xf32, #tpu.memory_space<smem>>
    %42 = vector.broadcast %41 : f32 to vector<67x128xf32>
    %43 = arith.mulf %9, %42 : vector<67x128xf32>
    %44 = arith.addf %40, %43 : vector<67x128xf32>
    %c13 = arith.constant 13 : index
    %45 = memref.load %arg1[%c13] : memref<30xf32, #tpu.memory_space<smem>>
    %46 = vector.broadcast %45 : f32 to vector<67x128xf32>
    %47 = arith.mulf %12, %46 : vector<67x128xf32>
    %48 = arith.addf %44, %47 : vector<67x128xf32>
    %c19 = arith.constant 19 : index
    %49 = memref.load %arg1[%c19] : memref<30xf32, #tpu.memory_space<smem>>
    %50 = vector.broadcast %49 : f32 to vector<67x128xf32>
    %51 = arith.mulf %15, %50 : vector<67x128xf32>
    %52 = arith.addf %48, %51 : vector<67x128xf32>
    %c25 = arith.constant 25 : index
    %53 = memref.load %arg1[%c25] : memref<30xf32, #tpu.memory_space<smem>>
    %54 = vector.broadcast %53 : f32 to vector<67x128xf32>
    %55 = arith.mulf %18, %54 : vector<67x128xf32>
    %56 = arith.addf %52, %55 : vector<67x128xf32>
    %c1_i32 = arith.constant 1 : i32
    %57 = tpu.dynamic_rotate %56 by %c1_i32 dim 1 : vector<67x128xf32>, i32 -> vector<67x128xf32>
    %58 = arith.addf %37, %57 : vector<67x128xf32>
    %c2 = arith.constant 2 : index
    %59 = memref.load %arg1[%c2] : memref<30xf32, #tpu.memory_space<smem>>
    %60 = vector.broadcast %59 : f32 to vector<67x128xf32>
    %61 = arith.mulf %6, %60 : vector<67x128xf32>
    %c8 = arith.constant 8 : index
    %62 = memref.load %arg1[%c8] : memref<30xf32, #tpu.memory_space<smem>>
    %63 = vector.broadcast %62 : f32 to vector<67x128xf32>
    %64 = arith.mulf %9, %63 : vector<67x128xf32>
    %65 = arith.addf %61, %64 : vector<67x128xf32>
    %c14 = arith.constant 14 : index
    %66 = memref.load %arg1[%c14] : memref<30xf32, #tpu.memory_space<smem>>
    %67 = vector.broadcast %66 : f32 to vector<67x128xf32>
    %68 = arith.mulf %12, %67 : vector<67x128xf32>
    %69 = arith.addf %65, %68 : vector<67x128xf32>
    %c20 = arith.constant 20 : index
    %70 = memref.load %arg1[%c20] : memref<30xf32, #tpu.memory_space<smem>>
    %71 = vector.broadcast %70 : f32 to vector<67x128xf32>
    %72 = arith.mulf %15, %71 : vector<67x128xf32>
    %73 = arith.addf %69, %72 : vector<67x128xf32>
    %c26 = arith.constant 26 : index
    %74 = memref.load %arg1[%c26] : memref<30xf32, #tpu.memory_space<smem>>
    %75 = vector.broadcast %74 : f32 to vector<67x128xf32>
    %76 = arith.mulf %18, %75 : vector<67x128xf32>
    %77 = arith.addf %73, %76 : vector<67x128xf32>
    %c2_i32 = arith.constant 2 : i32
    %78 = tpu.dynamic_rotate %77 by %c2_i32 dim 1 : vector<67x128xf32>, i32 -> vector<67x128xf32>
    %79 = arith.addf %58, %78 : vector<67x128xf32>
    %80 = vector.broadcast %0 : f32 to vector<67x128xf32>
    %81 = arith.addf %79, %80 : vector<67x128xf32>
    %cst_5 = arith.constant 0.000000e+00 : f32
    %82 = vector.broadcast %cst_5 : f32 to vector<67x128xf32>
    %83 = arith.cmpf ogt, %81, %82 : vector<67x128xf32>
    %cst_6 = arith.constant 1.650000e-01 : f32
    %84 = vector.broadcast %cst_6 : f32 to vector<67x128xf32>
    %85 = arith.mulf %81, %84 : vector<67x128xf32>
    %86 = arith.select %83, %81, %85 : vector<67x128xi1>, vector<67x128xf32>
    %c0_7 = arith.constant 0 : index
    %c0_8 = arith.constant 0 : index
    %c0_9 = arith.constant 0 : index
    %c0_10 = arith.constant 0 : index
    %87 = vector.load %arg4[%c0_7, %c0_8, %c0_9, %c0_10] : memref<1x2x67x128xf32, #tpu.memory_space<vmem>>, vector<1x1x67x128xf32>
    %88 = vector.shape_cast %87 : vector<1x1x67x128xf32> to vector<67x128xf32>
    %89 = vector.shape_cast %86 : vector<67x128xf32> to vector<1x1x67x128xf32>
    tpu.vector_store %arg4[%c0_7, %c0_8, %c0_9, %c0_10], %89 {strides = array<i32>} : memref<1x2x67x128xf32, #tpu.memory_space<vmem>>, vector<1x1x67x128xf32>,
    %c3 = arith.constant 3 : index
    %90 = memref.load %arg1[%c3] : memref<30xf32, #tpu.memory_space<smem>>
    %91 = vector.broadcast %90 : f32 to vector<67x128xf32>
    %92 = arith.mulf %6, %91 : vector<67x128xf32>
    %c9 = arith.constant 9 : index
    %93 = memref.load %arg1[%c9] : memref<30xf32, #tpu.memory_space<smem>>
    %94 = vector.broadcast %93 : f32 to vector<67x128xf32>
    %95 = arith.mulf %9, %94 : vector<67x128xf32>
    %96 = arith.addf %92, %95 : vector<67x128xf32>
    %c15 = arith.constant 15 : index
    %97 = memref.load %arg1[%c15] : memref<30xf32, #tpu.memory_space<smem>>
    %98 = vector.broadcast %97 : f32 to vector<67x128xf32>
    %99 = arith.mulf %12, %98 : vector<67x128xf32>
    %100 = arith.addf %96, %99 : vector<67x128xf32>
    %c21 = arith.constant 21 : index
    %101 = memref.load %arg1[%c21] : memref<30xf32, #tpu.memory_space<smem>>
    %102 = vector.broadcast %101 : f32 to vector<67x128xf32>
    %103 = arith.mulf %15, %102 : vector<67x128xf32>
    %104 = arith.addf %100, %103 : vector<67x128xf32>
    %c27 = arith.constant 27 : index
    %105 = memref.load %arg1[%c27] : memref<30xf32, #tpu.memory_space<smem>>
    %106 = vector.broadcast %105 : f32 to vector<67x128xf32>
    %107 = arith.mulf %18, %106 : vector<67x128xf32>
    %108 = arith.addf %104, %107 : vector<67x128xf32>
    %c4 = arith.constant 4 : index
    %109 = memref.load %arg1[%c4] : memref<30xf32, #tpu.memory_space<smem>>
    %110 = vector.broadcast %109 : f32 to vector<67x128xf32>
    %111 = arith.mulf %6, %110 : vector<67x128xf32>
    %c10 = arith.constant 10 : index
    %112 = memref.load %arg1[%c10] : memref<30xf32, #tpu.memory_space<smem>>
    %113 = vector.broadcast %112 : f32 to vector<67x128xf32>
    %114 = arith.mulf %9, %113 : vector<67x128xf32>
    %115 = arith.addf %111, %114 : vector<67x128xf32>
    %c16 = arith.constant 16 : index
    %116 = memref.load %arg1[%c16] : memref<30xf32, #tpu.memory_space<smem>>
    %117 = vector.broadcast %116 : f32 to vector<67x128xf32>
    %118 = arith.mulf %12, %117 : vector<67x128xf32>
    %119 = arith.addf %115, %118 : vector<67x128xf32>
    %c22 = arith.constant 22 : index
    %120 = memref.load %arg1[%c22] : memref<30xf32, #tpu.memory_space<smem>>
    %121 = vector.broadcast %120 : f32 to vector<67x128xf32>
    %122 = arith.mulf %15, %121 : vector<67x128xf32>
    %123 = arith.addf %119, %122 : vector<67x128xf32>
    %c28 = arith.constant 28 : index
    %124 = memref.load %arg1[%c28] : memref<30xf32, #tpu.memory_space<smem>>
    %125 = vector.broadcast %124 : f32 to vector<67x128xf32>
    %126 = arith.mulf %18, %125 : vector<67x128xf32>
    %127 = arith.addf %123, %126 : vector<67x128xf32>
    %c1_i32_11 = arith.constant 1 : i32
    %128 = tpu.dynamic_rotate %127 by %c1_i32_11 dim 1 : vector<67x128xf32>, i32 -> vector<67x128xf32>
    %129 = arith.addf %108, %128 : vector<67x128xf32>
    %c5 = arith.constant 5 : index
    %130 = memref.load %arg1[%c5] : memref<30xf32, #tpu.memory_space<smem>>
    %131 = vector.broadcast %130 : f32 to vector<67x128xf32>
    %132 = arith.mulf %6, %131 : vector<67x128xf32>
    %c11 = arith.constant 11 : index
    %133 = memref.load %arg1[%c11] : memref<30xf32, #tpu.memory_space<smem>>
    %134 = vector.broadcast %133 : f32 to vector<67x128xf32>
    %135 = arith.mulf %9, %134 : vector<67x128xf32>
    %136 = arith.addf %132, %135 : vector<67x128xf32>
    %c17 = arith.constant 17 : index
    %137 = memref.load %arg1[%c17] : memref<30xf32, #tpu.memory_space<smem>>
    %138 = vector.broadcast %137 : f32 to vector<67x128xf32>
    %139 = arith.mulf %12, %138 : vector<67x128xf32>
    %140 = arith.addf %136, %139 : vector<67x128xf32>
    %c23 = arith.constant 23 : index
    %141 = memref.load %arg1[%c23] : memref<30xf32, #tpu.memory_space<smem>>
    %142 = vector.broadcast %141 : f32 to vector<67x128xf32>
    %143 = arith.mulf %15, %142 : vector<67x128xf32>
    %144 = arith.addf %140, %143 : vector<67x128xf32>
    %c29 = arith.constant 29 : index
    %145 = memref.load %arg1[%c29] : memref<30xf32, #tpu.memory_space<smem>>
    %146 = vector.broadcast %145 : f32 to vector<67x128xf32>
    %147 = arith.mulf %18, %146 : vector<67x128xf32>
    %148 = arith.addf %144, %147 : vector<67x128xf32>
    %c2_i32_12 = arith.constant 2 : i32
    %149 = tpu.dynamic_rotate %148 by %c2_i32_12 dim 1 : vector<67x128xf32>, i32 -> vector<67x128xf32>
    %150 = arith.addf %129, %149 : vector<67x128xf32>
    %151 = vector.broadcast %0 : f32 to vector<67x128xf32>
    %152 = arith.addf %150, %151 : vector<67x128xf32>
    %cst_13 = arith.constant 0.000000e+00 : f32
    %153 = vector.broadcast %cst_13 : f32 to vector<67x128xf32>
    %154 = arith.cmpf ogt, %152, %153 : vector<67x128xf32>
    %cst_14 = arith.constant 1.650000e-01 : f32
    %155 = vector.broadcast %cst_14 : f32 to vector<67x128xf32>
    %156 = arith.mulf %152, %155 : vector<67x128xf32>
    %157 = arith.select %154, %152, %156 : vector<67x128xi1>, vector<67x128xf32>
    %c0_15 = arith.constant 0 : index
    %c1_16 = arith.constant 1 : index
    %c0_17 = arith.constant 0 : index
    %c0_18 = arith.constant 0 : index
    %158 = vector.load %arg4[%c0_15, %c1_16, %c0_17, %c0_18] : memref<1x2x67x128xf32, #tpu.memory_space<vmem>>, vector<1x1x67x128xf32>
    %159 = vector.shape_cast %158 : vector<1x1x67x128xf32> to vector<67x128xf32>
    %160 = vector.shape_cast %157 : vector<67x128xf32> to vector<1x1x67x128xf32>
    tpu.vector_store %arg4[%c0_15, %c1_16, %c0_17, %c0_18], %160 {strides = array<i32>} : memref<1x2x67x128xf32, #tpu.memory_space<vmem>>, vector<1x1x67x128xf32>,
    return
  }
  func.func @transform_0(%arg0: i32) -> i32 {
    %c0_i32 = arith.constant 0 : i32
    %c0_i32_0 = arith.constant 0 : i32
    return %c0_i32 : i32
  }
  func.func @transform_1(%arg0: i32) -> i32 {
    %c0_i32 = arith.constant 0 : i32
    %c0_i32_0 = arith.constant 0 : i32
    return %c0_i32 : i32
  }
  func.func @transform_2(%arg0: i32) -> (i32, i32, i32, i32) {
    %c0_i32 = arith.constant 0 : i32
    %c0_i32_0 = arith.constant 0 : i32
    %c0_i32_1 = arith.constant 0 : i32
    %c0_i32_2 = arith.constant 0 : i32
    return %arg0, %c0_i32, %c0_i32_0, %c0_i32_1 : i32, i32, i32, i32
  }
  func.func @transform_3(%arg0: i32) -> (i32, i32, i32, i32) {
    %c0_i32 = arith.constant 0 : i32
    %c0_i32_0 = arith.constant 0 : i32
    %c0_i32_1 = arith.constant 0 : i32
    %c0_i32_2 = arith.constant 0 : i32
    return %arg0, %c0_i32, %c0_i32_0, %c0_i32_1 : i32, i32, i32, i32
  }
}

</mosaic_0001>

<llo_original>
// kernel: tpu_custom_call.1
$region0: #{tpu_custom_call.1}
  #allocation0 [shape = 'u32[]', space=smem, size = 0x4, offset = 0x4, fixed_abs, tag = 'smem constant byte address 0x4 - core index']
  #allocation1 [shape = 'u32[144,128]{1,0:T(1,128)}', space=vmem, size = 0x12000, scoped, tag = 'internal scratch']
  #allocation2 [shape = 'f32[1]{0:T(128)S(6)}', space=smem, size = 0x200, scoped, tag = 'scoped memory for tpu_custom_call.1']
  %s0 = inlined_call_operand.vmem [shape: f32[30], index: 0, kind: input, shape index: {}]
  %s1 = inlined_call_operand.<no memory space> [shape: f32[1], index: 1, kind: input, shape index: {}]
  %s2 = inlined_call_operand.vmem [shape: f32[2,5,67,59], index: 2, kind: input, shape index: {}]
  %s3 = inlined_call_operand.vmem [shape: f32[2,2,67,128], index: 3, kind: output, shape index: {}]
  %s4 = sld [smem:[#allocation0]]
  $region49: #{tpu_custom_call.1} parent=0
    _
  %s6 = ssub.s32 1, %s4
  %s7 = scalar_select 0, %s6, %s4
  %8 = sst [smem:[#allocation2]] %s1
  $region1: #{tpu_custom_call.1} parent=0
    #allocation3 [shape = 'u8[512]{0}', space=smem, size = 0x200, scoped, tag = 'input window, operand 0, single buffered']
    #allocation4 [shape = 's32[2]{0}', space=sflag, size = 0x8, scoped, tag = 'scoped memory for tpu_custom_call.1']
    %9 = vsyncpa [#allocation4], 0
    loop: start=0, step=1, limit=4
    $region2: #{tpu_custom_call.1} parent=1 // loop_pre_header
      _
    $region3: #{tpu_custom_call.1} parent=1 // loop_header
      %s11 = sphi 0, %s15
      %p12 = scmp.ge.s32.totalorder %s11, 4
      %s19 = sphi 0, %s19
      %s21 = sphi 0, %s19
      %s22 = sphi 0, %s21
      %s36 = sphi 0, %s22
      %s40 = sphi 0, %s40
      %s42 = sphi 0, %s40
      %s43 = sphi 0, %s42
      %s57 = sphi 0, %s43
      %s63 = sphi 0, %s65
      %s66 = sphi 0, %s63
      %s67 = sphi 0, %s66
      %s83 = sphi 0, %s67
      %s89 = sphi 0, %s91
      %s92 = sphi 0, %s89
      %s93 = sphi 0, %s92
      %s109 = sphi 0, %s93
    $region4: #{tpu_custom_call.1} parent=1 // loop_header_branch
      %14 = sbr.rel (%p12) target = $region8
    $region5: #{tpu_custom_call.1} parent=1 // loop_body
      %s16 = ssub.s32 %s11, 1
      %s17 = ssub.s32 %s11, 2
      %s18 = sadd.s32 %s11, 1
      %s20 = sadd.s32 %s19, 1
      %p23 = scmp.eq.s32.totalorder %s11, 1
      %p24 = scmp.ne.s32.totalorder %s19, %s21
      %p25 = scmp.eq.s32.totalorder %s11, 0
      %p26 = por %p24, %p25
      %p27 = scmp.ne.s32.totalorder %s19, %s21
      %p28 = scmp.eq.s32.totalorder %s16, 1
      %p29 = por %p27, %p28
      %p30 = scmp.ne.s32.totalorder %s21, %s22
      %p31 = scmp.eq.s32.totalorder %s16, 0
      %p32 = por %p30, %p31
      %p33 = scmp.ne.s32.totalorder %s21, %s22
      %p34 = scmp.eq.s32.totalorder %s17, 1
      %p35 = por %p33, %p34
      %p37 = scmp.ne.s32.totalorder %s22, %s36
      %p38 = scmp.eq.s32.totalorder %s17, 0
      %p39 = por %p37, %p38
      %s41 = sadd.s32 %s40, 1
      %p44 = scmp.eq.s32.totalorder %s11, 1
      %p45 = scmp.ne.s32.totalorder %s40, %s42
      %p46 = scmp.eq.s32.totalorder %s11, 0
      %p47 = por %p45, %p46
      %p48 = scmp.ne.s32.totalorder %s40, %s42
      %p49 = scmp.eq.s32.totalorder %s16, 1
      %p50 = por %p48, %p49
      %p51 = scmp.ne.s32.totalorder %s42, %s43
      %p52 = scmp.eq.s32.totalorder %s16, 0
      %p53 = por %p51, %p52
      %p54 = scmp.ne.s32.totalorder %s42, %s43
      %p55 = scmp.eq.s32.totalorder %s17, 1
      %p56 = por %p54, %p55
      %p58 = scmp.ne.s32.totalorder %s43, %s57
      %p59 = scmp.eq.s32.totalorder %s17, 0
      %p60 = por %p58, %p59
      %s61 = ssub.s32 %s11, %s18
      %p62 = scmp.eq.s32.totalorder %s61, 0
      %s64 = sadd.s32 %s63, 1
      %s65 = scalar_select %p62, %s63, %s64
      %p68 = pneg %p62
      %p69 = scmp.eq.s32.totalorder %s11, 1
      %p70 = por %p68, %p69
      %p71 = scmp.ne.s32.totalorder %s63, %s66
      %p72 = scmp.eq.s32.totalorder %s11, 0
      %p73 = por %p71, %p72
      %p74 = scmp.ne.s32.totalorder %s63, %s66
      %p75 = scmp.eq.s32.totalorder %s16, 1
      %p76 = por %p74, %p75
      %p77 = scmp.ne.s32.totalorder %s66, %s67
      %p78 = scmp.eq.s32.totalorder %s16, 0
      %p79 = por %p77, %p78
      %p80 = scmp.ne.s32.totalorder %s66, %s67
      %p81 = scmp.eq.s32.totalorder %s17, 1
      %p82 = por %p80, %p81
      %p84 = scmp.ne.s32.totalorder %s67, %s83
      %p85 = scmp.eq.s32.totalorder %s17, 0
      %p86 = por %p84, %p85
      %s87 = ssub.s32 %s11, %s18
      %p88 = scmp.eq.s32.totalorder %s87, 0
      %s90 = sadd.s32 %s89, 1
      %s91 = scalar_select %p88, %s89, %s90
      %p94 = pneg %p88
      %p95 = scmp.eq.s32.totalorder %s11, 1
      %p96 = por %p94, %p95
      %p97 = scmp.ne.s32.totalorder %s89, %s92
      %p98 = scmp.eq.s32.totalorder %s11, 0
      %p99 = por %p97, %p98
      %p100 = scmp.ne.s32.totalorder %s89, %s92
      %p101 = scmp.eq.s32.totalorder %s16, 1
      %p102 = por %p100, %p101
      %p103 = scmp.ne.s32.totalorder %s92, %s93
      %p104 = scmp.eq.s32.totalorder %s16, 0
      %p105 = por %p103, %p104
      %p106 = scmp.ne.s32.totalorder %s92, %s93
      %p107 = scmp.eq.s32.totalorder %s17, 1
      %p108 = por %p106, %p107
      %p110 = scmp.ne.s32.totalorder %s93, %s109
      %p111 = scmp.eq.s32.totalorder %s17, 0
      %p112 = por %p110, %p111
      %p113 = scmp.le.s32.totalorder 1, %s11
      %p114 = scmp.lt.s32.totalorder %s11, 3
      %p115 = pnand %p113, %p114
      %p116 = pneg %p115
      // Predicated region
      $region9: #{tpu_custom_call.1} parent=5 // pred_check
        _
      $region10: #{tpu_custom_call.1} parent=5 // pred_check_branch
        %118 = sbr.rel (%p115) target = $region12
      $region11: #{tpu_custom_call.1} parent=5 // pred_region
        %s119 = ssub.s32 %s11, 1
        // Predicated region
        $region13: #{tpu_custom_call.1} parent=11 // pred_check
          %p120 = pneg %p32
        $region14: #{tpu_custom_call.1} parent=11 // pred_check_branch
          %122 = sbr.rel (%p120) target = $region16
        $region15: #{tpu_custom_call.1} parent=11 // pred_region
          %s124 = ssub.s32 16, 16
          %125 = vsyncadd [#allocation4], %s124
          %s127 = sshll.u32 %s0, 4
          %s128 = int_to_ptr.vmem [resolvable:$true] %s127
          %130 = dma.vmem_to_smem %s128, 16, [#allocation3], [#allocation4]
        $region16: #{tpu_custom_call.1} parent=11 // pred_fallthru
          _
        // Predicated region
        $region17: #{tpu_custom_call.1} parent=11 // pred_check
          %p131 = pneg %p53
        $region18: #{tpu_custom_call.1} parent=11 // pred_check_branch
          %133 = sbr.rel (%p131) target = $region20
        $region19: #{tpu_custom_call.1} parent=11 // pred_region
          _
        $region20: #{tpu_custom_call.1} parent=11 // pred_fallthru
          _
      $region12: #{tpu_custom_call.1} parent=5 // pred_fallthru
        _
      %p134 = scmp.lt.s32.totalorder %s11, 2
      // Predicated region
      $region21: #{tpu_custom_call.1} parent=5 // pred_check
        %p135 = pneg %p134
      $region22: #{tpu_custom_call.1} parent=5 // pred_check_branch
        %137 = sbr.rel (%p135) target = $region24
      $region23: #{tpu_custom_call.1} parent=5 // pred_region
        // Predicated region
        $region25: #{tpu_custom_call.1} parent=23 // pred_check
          %p138 = pneg %p73
        $region26: #{tpu_custom_call.1} parent=23 // pred_check_branch
          %140 = sbr.rel (%p138) target = $region28
        $region27: #{tpu_custom_call.1} parent=23 // pred_region
          %p141 = scmp.lt.s32.totalorder %s11, 1
          %s142 = scalar_select %p141, %s11, 1
          %s143 = smul.addr %s142, 45
          %s144 = smul.addr %s143, 8
          %s145 = scalar_lea.vmem %s2, %s144
        $region28: #{tpu_custom_call.1} parent=23 // pred_fallthru
          _
      $region24: #{tpu_custom_call.1} parent=5 // pred_fallthru
        _
      %p146 = scmp.le.s32.totalorder 1, %s11
      %p147 = scmp.lt.s32.totalorder %s11, 3
      %p148 = pnand %p146, %p147
      %p149 = pneg %p148
      // Predicated region
      $region29: #{tpu_custom_call.1} parent=5 // pred_check
        _
      $region30: #{tpu_custom_call.1} parent=5 // pred_check_branch
        %151 = sbr.rel (%p148) target = $region32
      $region31: #{tpu_custom_call.1} parent=5 // pred_region
        %s152 = ssub.s32 %s11, 1
        // Predicated region
        $region33: #{tpu_custom_call.1} parent=31 // pred_check
          %p153 = pneg %p32
        $region34: #{tpu_custom_call.1} parent=31 // pred_check_branch
          %155 = sbr.rel (%p153) target = $region36
        $region35: #{tpu_custom_call.1} parent=31 // pred_region
          %156 = dma.done [#allocation4], 16
        $region36: #{tpu_custom_call.1} parent=31 // pred_fallthru
          _
        %157 = sfence
        %p158 = pneg %p32
        %p159 = pneg %p29
        %p160 = pneg %p53
        %p161 = pneg %p50
        %p162 = scmp.lt.s32.totalorder %s16, 1
        %s163 = scalar_select %p162, %s16, 1
        %s164 = smul.addr %s163, 45
        %s165 = smul.addr %s164, 8
        %s166 = scalar_lea.vmem %s2, %s165
        %p167 = pneg %p79
        %p168 = pneg %p76
        %p169 = pneg %p105
        %p170 = pneg %p102
        %p171 = scmp.lt.s32.totalorder %s16, 1
        %s172 = scalar_select %p171, %s16, 1
        %s173 = smul.addr %s172, 18
        %s174 = smul.addr %s173, 8
        %s175 = scalar_lea.vmem %s3, %s174
        %p176 = scmp.lt.s32.totalorder %s16, 1
        %s177 = scalar_select %p176, %s16, 1
        %s178 = smul.addr %s177, 45
        %s179 = smul.addr %s178, 8
        %s180 = scalar_lea.vmem %s2, %s179
        %p181 = scmp.lt.s32.totalorder %s16, 1
        %s182 = scalar_select %p181, %s16, 1
        %s183 = smul.addr %s182, 18
        %s184 = smul.addr %s183, 8
        %s185 = scalar_lea.vmem %s3, %s184
        %s186 = sld [smem:[#allocation2]]
        %v187 = vld [vmem:[%s180] sm:$0xff]
        %v188 = vld [vmem:[%s180 + $0x8] sm:$0xff]
        %v189 = vld [vmem:[%s180 + $0x10] sm:$0xff]
        %v190 = vld [vmem:[%s180 + $0x18] sm:$0xff]
        %v191 = vld [vmem:[%s180 + $0x20] sm:$0xff]
        %v192 = vld [vmem:[%s180 + $0x28] sm:$0xff]
        %v193 = vld [vmem:[%s180 + $0x30] sm:$0xff]
        %v194 = vld [vmem:[%s180 + $0x38] sm:$0xff]
        %v195 = vld [vmem:[%s180 + $0x40] sm:$0x7]
        %v196 = vld [vmem:[%s180 + $0x48] sm:$0xff]
        %v197 = vld [vmem:[%s180 + $0x50] sm:$0xff]
        %v198 = vld [vmem:[%s180 + $0x58] sm:$0xff]
        %v199 = vld [vmem:[%s180 + $0x60] sm:$0xff]
        %v200 = vld [vmem:[%s180 + $0x68] sm:$0xff]
        %v201 = vld [vmem:[%s180 + $0x70] sm:$0xff]
        %v202 = vld [vmem:[%s180 + $0x78] sm:$0xff]
        %v203 = vld [vmem:[%s180 + $0x80] sm:$0xff]
        %v204 = vld [vmem:[%s180 + $0x88] sm:$0x7]
        %v205 = vld [vmem:[%s180 + $0x90] sm:$0xff]
        %v206 = vld [vmem:[%s180 + $0x98] sm:$0xff]
        %v207 = vld [vmem:[%s180 + $0xa0] sm:$0xff]
        %v208 = vld [vmem:[%s180 + $0xa8] sm:$0xff]
        %v209 = vld [vmem:[%s180 + $0xb0] sm:$0xff]
        %v210 = vld [vmem:[%s180 + $0xb8] sm:$0xff]
        %v211 = vld [vmem:[%s180 + $0xc0] sm:$0xff]
        %v212 = vld [vmem:[%s180 + $0xc8] sm:$0xff]
        %v213 = vld [vmem:[%s180 + $0xd0] sm:$0x7]
        %v214 = vld [vmem:[%s180 + $0xd8] sm:$0xff]
        %v215 = vld [vmem:[%s180 + $0xe0] sm:$0xff]
        %v216 = vld [vmem:[%s180 + $0xe8] sm:$0xff]
        %v217 = vld [vmem:[%s180 + $0xf0] sm:$0xff]
        %v218 = vld [vmem:[%s180 + $0xf8] sm:$0xff]
        %v219 = vld [vmem:[%s180 + $0x100] sm:$0xff]
        %v220 = vld [vmem:[%s180 + $0x108] sm:$0xff]
        %v221 = vld [vmem:[%s180 + $0x110] sm:$0xff]
        %v222 = vld [vmem:[%s180 + $0x118] sm:$0x7]
        %v223 = vld [vmem:[%s180 + $0x120] sm:$0xff]
        %v224 = vld [vmem:[%s180 + $0x128] sm:$0xff]
        %v225 = vld [vmem:[%s180 + $0x130] sm:$0xff]
        %v226 = vld [vmem:[%s180 + $0x138] sm:$0xff]
        %v227 = vld [vmem:[%s180 + $0x140] sm:$0xff]
        %v228 = vld [vmem:[%s180 + $0x148] sm:$0xff]
        %v229 = vld [vmem:[%s180 + $0x150] sm:$0xff]
        %v230 = vld [vmem:[%s180 + $0x158] sm:$0xff]
        %v231 = vld [vmem:[%s180 + $0x160] sm:$0x7]
        %vm232 = vcmask 482304
        %v233 = vsel %vm232, %v187, 0.0
        %v234 = vsel %vm232, %v188, 0.0
        %v235 = vsel %vm232, %v189, 0.0
        %v236 = vsel %vm232, %v190, 0.0
        %v237 = vsel %vm232, %v191, 0.0
        %v238 = vsel %vm232, %v192, 0.0
        %v239 = vsel %vm232, %v193, 0.0
        %v240 = vsel %vm232, %v194, 0.0
        %v241 = vsel %vm232, %v195, 0.0
        %v242 = vsel %vm232, %v196, 0.0
        %v243 = vsel %vm232, %v197, 0.0
        %v244 = vsel %vm232, %v198, 0.0
        %v245 = vsel %vm232, %v199, 0.0
        %v246 = vsel %vm232, %v200, 0.0
        %v247 = vsel %vm232, %v201, 0.0
        %v248 = vsel %vm232, %v202, 0.0
        %v249 = vsel %vm232, %v203, 0.0
        %v250 = vsel %vm232, %v204, 0.0
        %v251 = vsel %vm232, %v205, 0.0
        %v252 = vsel %vm232, %v206, 0.0
        %v253 = vsel %vm232, %v207, 0.0
        %v254 = vsel %vm232, %v208, 0.0
        %v255 = vsel %vm232, %v209, 0.0
        %v256 = vsel %vm232, %v210, 0.0
        %v257 = vsel %vm232, %v211, 0.0
        %v258 = vsel %vm232, %v212, 0.0
        %v259 = vsel %vm232, %v213, 0.0
        %v260 = vsel %vm232, %v214, 0.0
        %v261 = vsel %vm232, %v215, 0.0
        %v262 = vsel %vm232, %v216, 0.0
        %v263 = vsel %vm232, %v217, 0.0
        %v264 = vsel %vm232, %v218, 0.0
        %v265 = vsel %vm232, %v219, 0.0
        %v266 = vsel %vm232, %v220, 0.0
        %v267 = vsel %vm232, %v221, 0.0
        %v268 = vsel %vm232, %v222, 0.0
        %v269 = vsel %vm232, %v223, 0.0
        %v270 = vsel %vm232, %v224, 0.0
        %v271 = vsel %vm232, %v225, 0.0
        %v272 = vsel %vm232, %v226, 0.0
        %v273 = vsel %vm232, %v227, 0.0
        %v274 = vsel %vm232, %v228, 0.0
        %v275 = vsel %vm232, %v229, 0.0
        %v276 = vsel %vm232, %v230, 0.0
        %v277 = vsel %vm232, %v231, 0.0
        %s278 = sld [smem:[#allocation3]]
        %v279 = vstv %s278
        %v280 = vmul.f32 %v233, %v279
        %v281 = vmul.f32 %v234, %v279
        %v282 = vmul.f32 %v235, %v279
        %v283 = vmul.f32 %v236, %v279
        %v284 = vmul.f32 %v237, %v279
        %v285 = vmul.f32 %v238, %v279
        %v286 = vmul.f32 %v239, %v279
        %v287 = vmul.f32 %v240, %v279
        %v288 = vmul.f32 %v241, %v279
        %s289 = sld [smem:[#allocation3 + $0x6]]
        %v290 = vstv %s289
        %v291 = vmul.f32 %v242, %v290
        %v292 = vmul.f32 %v243, %v290
        %v293 = vmul.f32 %v244, %v290
        %v294 = vmul.f32 %v245, %v290
        %v295 = vmul.f32 %v246, %v290
        %v296 = vmul.f32 %v247, %v290
        %v297 = vmul.f32 %v248, %v290
        %v298 = vmul.f32 %v249, %v290
        %v299 = vmul.f32 %v250, %v290
        %v300 = vadd.f32 %v280, %v291
        %v301 = vadd.f32 %v281, %v292
        %v302 = vadd.f32 %v282, %v293
        %v303 = vadd.f32 %v283, %v294
        %v304 = vadd.f32 %v284, %v295
        %v305 = vadd.f32 %v285, %v296
        %v306 = vadd.f32 %v286, %v297
        %v307 = vadd.f32 %v287, %v298
        %v308 = vadd.f32 %v288, %v299
        %s309 = sld [smem:[#allocation3 + $0xc]]
        %v310 = vstv %s309
        %v311 = vmul.f32 %v251, %v310
        %v312 = vmul.f32 %v252, %v310
        %v313 = vmul.f32 %v253, %v310
        %v314 = vmul.f32 %v254, %v310
        %v315 = vmul.f32 %v255, %v310
        %v316 = vmul.f32 %v256, %v310
        %v317 = vmul.f32 %v257, %v310
        %v318 = vmul.f32 %v258, %v310
        %v319 = vmul.f32 %v259, %v310
        %v320 = vadd.f32 %v300, %v311
        %v321 = vadd.f32 %v301, %v312
        %v322 = vadd.f32 %v302, %v313
        %v323 = vadd.f32 %v303, %v314
        %v324 = vadd.f32 %v304, %v315
        %v325 = vadd.f32 %v305, %v316
        %v326 = vadd.f32 %v306, %v317
        %v327 = vadd.f32 %v307, %v318
        %v328 = vadd.f32 %v308, %v319
        %s329 = sld [smem:[#allocation3 + $0x12]]
        %v330 = vstv %s329
        %v331 = vmul.f32 %v260, %v330
        %v332 = vmul.f32 %v261, %v330
        %v333 = vmul.f32 %v262, %v330
        %v334 = vmul.f32 %v263, %v330
        %v335 = vmul.f32 %v264, %v330
        %v336 = vmul.f32 %v265, %v330
        %v337 = vmul.f32 %v266, %v330
        %v338 = vmul.f32 %v267, %v330
        %v339 = vmul.f32 %v268, %v330
        %v340 = vadd.f32 %v320, %v331
        %v341 = vadd.f32 %v321, %v332
        %v342 = vadd.f32 %v322, %v333
        %v343 = vadd.f32 %v323, %v334
        %v344 = vadd.f32 %v324, %v335
        %v345 = vadd.f32 %v325, %v336
        %v346 = vadd.f32 %v326, %v337
        %v347 = vadd.f32 %v327, %v338
        %v348 = vadd.f32 %v328, %v339
        %s349 = sld [smem:[#allocation3 + $0x18]]
        %v350 = vstv %s349
        %v351 = vmul.f32 %v269, %v350
        %v352 = vmul.f32 %v270, %v350
        %v353 = vmul.f32 %v271, %v350
        %v354 = vmul.f32 %v272, %v350
        %v355 = vmul.f32 %v273, %v350
        %v356 = vmul.f32 %v274, %v350
        %v357 = vmul.f32 %v275, %v350
        %v358 = vmul.f32 %v276, %v350
        %v359 = vmul.f32 %v277, %v350
        %v360 = vadd.f32 %v340, %v351
        %v361 = vadd.f32 %v341, %v352
        %v362 = vadd.f32 %v342, %v353
        %v363 = vadd.f32 %v343, %v354
        %v364 = vadd.f32 %v344, %v355
        %v365 = vadd.f32 %v345, %v356
        %v366 = vadd.f32 %v346, %v357
        %v367 = vadd.f32 %v347, %v358
        %v368 = vadd.f32 %v348, %v359
        %s369 = sld [smem:[#allocation3 + $0x1]]
        %v370 = vstv %s369
        %v371 = vmul.f32 %v233, %v370
        %v372 = vmul.f32 %v234, %v370
        %v373 = vmul.f32 %v235, %v370
        %v374 = vmul.f32 %v236, %v370
        %v375 = vmul.f32 %v237, %v370
        %v376 = vmul.f32 %v238, %v370
        %v377 = vmul.f32 %v239, %v370
        %v378 = vmul.f32 %v240, %v370
        %v379 = vmul.f32 %v241, %v370
        %s380 = sld [smem:[#allocation3 + $0x7]]
        %v381 = vstv %s380
        %v382 = vmul.f32 %v242, %v381
        %v383 = vmul.f32 %v243, %v381
        %v384 = vmul.f32 %v244, %v381
        %v385 = vmul.f32 %v245, %v381
        %v386 = vmul.f32 %v246, %v381
        %v387 = vmul.f32 %v247, %v381
        %v388 = vmul.f32 %v248, %v381
        %v389 = vmul.f32 %v249, %v381
        %v390 = vmul.f32 %v250, %v381
        %v391 = vadd.f32 %v371, %v382
        %v392 = vadd.f32 %v372, %v383
        %v393 = vadd.f32 %v373, %v384
        %v394 = vadd.f32 %v374, %v385
        %v395 = vadd.f32 %v375, %v386
        %v396 = vadd.f32 %v376, %v387
        %v397 = vadd.f32 %v377, %v388
        %v398 = vadd.f32 %v378, %v389
        %v399 = vadd.f32 %v379, %v390
        %s400 = sld [smem:[#allocation3 + $0xd]]
        %v401 = vstv %s400
        %v402 = vmul.f32 %v251, %v401
        %v403 = vmul.f32 %v252, %v401
        %v404 = vmul.f32 %v253, %v401
        %v405 = vmul.f32 %v254, %v401
        %v406 = vmul.f32 %v255, %v401
        %v407 = vmul.f32 %v256, %v401
        %v408 = vmul.f32 %v257, %v401
        %v409 = vmul.f32 %v258, %v401
        %v410 = vmul.f32 %v259, %v401
        %v411 = vadd.f32 %v391, %v402
        %v412 = vadd.f32 %v392, %v403
        %v413 = vadd.f32 %v393, %v404
        %v414 = vadd.f32 %v394, %v405
        %v415 = vadd.f32 %v395, %v406
        %v416 = vadd.f32 %v396, %v407
        %v417 = vadd.f32 %v397, %v408
        %v418 = vadd.f32 %v398, %v409
        %v419 = vadd.f32 %v399, %v410
        %s420 = sld [smem:[#allocation3 + $0x13]]
        %v421 = vstv %s420
        %v422 = vmul.f32 %v260, %v421
        %v423 = vmul.f32 %v261, %v421
        %v424 = vmul.f32 %v262, %v421
        %v425 = vmul.f32 %v263, %v421
        %v426 = vmul.f32 %v264, %v421
        %v427 = vmul.f32 %v265, %v421
        %v428 = vmul.f32 %v266, %v421
        %v429 = vmul.f32 %v267, %v421
        %v430 = vmul.f32 %v268, %v421
        %v431 = vadd.f32 %v411, %v422
        %v432 = vadd.f32 %v412, %v423
        %v433 = vadd.f32 %v413, %v424
        %v434 = vadd.f32 %v414, %v425
        %v435 = vadd.f32 %v415, %v426
        %v436 = vadd.f32 %v416, %v427
        %v437 = vadd.f32 %v417, %v428
        %v438 = vadd.f32 %v418, %v429
        %v439 = vadd.f32 %v419, %v430
        %s440 = sld [smem:[#allocation3 + $0x19]]
        %v441 = vstv %s440
        %v442 = vmul.f32 %v269, %v441
        %v443 = vmul.f32 %v270, %v441
        %v444 = vmul.f32 %v271, %v441
        %v445 = vmul.f32 %v272, %v441
        %v446 = vmul.f32 %v273, %v441
        %v447 = vmul.f32 %v274, %v441
        %v448 = vmul.f32 %v275, %v441
        %v449 = vmul.f32 %v276, %v441
        %v450 = vmul.f32 %v277, %v441
        %v451 = vadd.f32 %v431, %v442
        %v452 = vadd.f32 %v432, %v443
        %v453 = vadd.f32 %v433, %v444
        %v454 = vadd.f32 %v434, %v445
        %v455 = vadd.f32 %v435, %v446
        %v456 = vadd.f32 %v436, %v447
        %v457 = vadd.f32 %v437, %v448
        %v458 = vadd.f32 %v438, %v449
        %v459 = vadd.f32 %v439, %v450
        %460 = vrot.lane.b32.xlu0 %v451, 1
        %v461 = vpop.permute.xlu0 %460
        %462 = vrot.lane.b32.xlu0 %v452, 1
        %v463 = vpop.permute.xlu0 %462
        %464 = vrot.lane.b32.xlu0 %v453, 1
        %v465 = vpop.permute.xlu0 %464
        %466 = vrot.lane.b32.xlu0 %v454, 1
        %v467 = vpop.permute.xlu0 %466
        %468 = vrot.lane.b32.xlu0 %v455, 1
        %v469 = vpop.permute.xlu0 %468
        %470 = vrot.lane.b32.xlu0 %v456, 1
        %v471 = vpop.permute.xlu0 %470
        %472 = vrot.lane.b32.xlu0 %v457, 1
        %v473 = vpop.permute.xlu0 %472
        %474 = vrot.lane.b32.xlu0 %v458, 1
        %v475 = vpop.permute.xlu0 %474
        %476 = vrot.lane.b32.xlu0 %v459, 1
        %v477 = vpop.permute.xlu0 %476
        %v478 = vadd.f32 %v360, %v461
        %v479 = vadd.f32 %v361, %v463
        %v480 = vadd.f32 %v362, %v465
        %v481 = vadd.f32 %v363, %v467
        %v482 = vadd.f32 %v364, %v469
        %v483 = vadd.f32 %v365, %v471
        %v484 = vadd.f32 %v366, %v473
        %v485 = vadd.f32 %v367, %v475
        %v486 = vadd.f32 %v368, %v477
        %s487 = sld [smem:[#allocation3 + $0x2]]
        %v488 = vstv %s487
        %v489 = vmul.f32 %v233, %v488
        %v490 = vmul.f32 %v234, %v488
        %v491 = vmul.f32 %v235, %v488
        %v492 = vmul.f32 %v236, %v488
        %v493 = vmul.f32 %v237, %v488
        %v494 = vmul.f32 %v238, %v488
        %v495 = vmul.f32 %v239, %v488
        %v496 = vmul.f32 %v240, %v488
        %v497 = vmul.f32 %v241, %v488
        %s498 = sld [smem:[#allocation3 + $0x8]]
        %v499 = vstv %s498
        %v500 = vmul.f32 %v242, %v499
        %v501 = vmul.f32 %v243, %v499
        %v502 = vmul.f32 %v244, %v499
        %v503 = vmul.f32 %v245, %v499
        %v504 = vmul.f32 %v246, %v499
        %v505 = vmul.f32 %v247, %v499
        %v506 = vmul.f32 %v248, %v499
        %v507 = vmul.f32 %v249, %v499
        %v508 = vmul.f32 %v250, %v499
        %v509 = vadd.f32 %v489, %v500
        %v510 = vadd.f32 %v490, %v501
        %v511 = vadd.f32 %v491, %v502
        %v512 = vadd.f32 %v492, %v503
        %v513 = vadd.f32 %v493, %v504
        %v514 = vadd.f32 %v494, %v505
        %v515 = vadd.f32 %v495, %v506
        %v516 = vadd.f32 %v496, %v507
        %v517 = vadd.f32 %v497, %v508
        %s518 = sld [smem:[#allocation3 + $0xe]]
        %v519 = vstv %s518
        %v520 = vmul.f32 %v251, %v519
        %v521 = vmul.f32 %v252, %v519
        %v522 = vmul.f32 %v253, %v519
        %v523 = vmul.f32 %v254, %v519
        %v524 = vmul.f32 %v255, %v519
        %v525 = vmul.f32 %v256, %v519
        %v526 = vmul.f32 %v257, %v519
        %v527 = vmul.f32 %v258, %v519
        %v528 = vmul.f32 %v259, %v519
        %v529 = vadd.f32 %v509, %v520
        %v530 = vadd.f32 %v510, %v521
        %v531 = vadd.f32 %v511, %v522
        %v532 = vadd.f32 %v512, %v523
        %v533 = vadd.f32 %v513, %v524
        %v534 = vadd.f32 %v514, %v525
        %v535 = vadd.f32 %v515, %v526
        %v536 = vadd.f32 %v516, %v527
        %v537 = vadd.f32 %v517, %v528
        %s538 = sld [smem:[#allocation3 + $0x14]]
        %v539 = vstv %s538
        %v540 = vmul.f32 %v260, %v539
        %v541 = vmul.f32 %v261, %v539
        %v542 = vmul.f32 %v262, %v539
        %v543 = vmul.f32 %v263, %v539
        %v544 = vmul.f32 %v264, %v539
        %v545 = vmul.f32 %v265, %v539
        %v546 = vmul.f32 %v266, %v539
        %v547 = vmul.f32 %v267, %v539
        %v548 = vmul.f32 %v268, %v539
        %v549 = vadd.f32 %v529, %v540
        %v550 = vadd.f32 %v530, %v541
        %v551 = vadd.f32 %v531, %v542
        %v552 = vadd.f32 %v532, %v543
        %v553 = vadd.f32 %v533, %v544
        %v554 = vadd.f32 %v534, %v545
        %v555 = vadd.f32 %v535, %v546
        %v556 = vadd.f32 %v536, %v547
        %v557 = vadd.f32 %v537, %v548
        %s558 = sld [smem:[#allocation3 + $0x1a]]
        %v559 = vstv %s558
        %v560 = vmul.f32 %v269, %v559
        %v561 = vmul.f32 %v270, %v559
        %v562 = vmul.f32 %v271, %v559
        %v563 = vmul.f32 %v272, %v559
        %v564 = vmul.f32 %v273, %v559
        %v565 = vmul.f32 %v274, %v559
        %v566 = vmul.f32 %v275, %v559
        %v567 = vmul.f32 %v276, %v559
        %v568 = vmul.f32 %v277, %v559
        %v569 = vadd.f32 %v549, %v560
        %v570 = vadd.f32 %v550, %v561
        %v571 = vadd.f32 %v551, %v562
        %v572 = vadd.f32 %v552, %v563
        %v573 = vadd.f32 %v553, %v564
        %v574 = vadd.f32 %v554, %v565
        %v575 = vadd.f32 %v555, %v566
        %v576 = vadd.f32 %v556, %v567
        %v577 = vadd.f32 %v557, %v568
        %578 = vrot.lane.b32.xlu0 %v569, 2
        %v579 = vpop.permute.xlu0 %578
        %580 = vrot.lane.b32.xlu0 %v570, 2
        %v581 = vpop.permute.xlu0 %580
        %582 = vrot.lane.b32.xlu0 %v571, 2
        %v583 = vpop.permute.xlu0 %582
        %584 = vrot.lane.b32.xlu0 %v572, 2
        %v585 = vpop.permute.xlu0 %584
        %586 = vrot.lane.b32.xlu0 %v573, 2
        %v587 = vpop.permute.xlu0 %586
        %588 = vrot.lane.b32.xlu0 %v574, 2
        %v589 = vpop.permute.xlu0 %588
        %590 = vrot.lane.b32.xlu0 %v575, 2
        %v591 = vpop.permute.xlu0 %590
        %592 = vrot.lane.b32.xlu0 %v576, 2
        %v593 = vpop.permute.xlu0 %592
        %594 = vrot.lane.b32.xlu0 %v577, 2
        %v595 = vpop.permute.xlu0 %594
        %v596 = vadd.f32 %v478, %v579
        %v597 = vadd.f32 %v479, %v581
        %v598 = vadd.f32 %v480, %v583
        %v599 = vadd.f32 %v481, %v585
        %v600 = vadd.f32 %v482, %v587
        %v601 = vadd.f32 %v483, %v589
        %v602 = vadd.f32 %v484, %v591
        %v603 = vadd.f32 %v485, %v593
        %v604 = vadd.f32 %v486, %v595
        %v605 = vstv %s186
        %v606 = vadd.f32 %v596, %v605
        %v607 = vadd.f32 %v597, %v605
        %v608 = vadd.f32 %v598, %v605
        %v609 = vadd.f32 %v599, %v605
        %v610 = vadd.f32 %v600, %v605
        %v611 = vadd.f32 %v601, %v605
        %v612 = vadd.f32 %v602, %v605
        %v613 = vadd.f32 %v603, %v605
        %v614 = vadd.f32 %v604, %v605
        %vm615 = vcmp.gt.f32.partialorder %v606, 0.0
        %vm616 = vcmp.gt.f32.partialorder %v607, 0.0
        %vm617 = vcmp.gt.f32.partialorder %v608, 0.0
        %vm618 = vcmp.gt.f32.partialorder %v609, 0.0
        %vm619 = vcmp.gt.f32.partialorder %v610, 0.0
        %vm620 = vcmp.gt.f32.partialorder %v611, 0.0
        %vm621 = vcmp.gt.f32.partialorder %v612, 0.0
        %vm622 = vcmp.gt.f32.partialorder %v613, 0.0
        %vm623 = vcmp.gt.f32.partialorder %v614, 0.0
        %v624 = vmul.f32 %v606, 0.165
        %v625 = vmul.f32 %v607, 0.165
        %v626 = vmul.f32 %v608, 0.165
        %v627 = vmul.f32 %v609, 0.165
        %v628 = vmul.f32 %v610, 0.165
        %v629 = vmul.f32 %v611, 0.165
        %v630 = vmul.f32 %v612, 0.165
        %v631 = vmul.f32 %v613, 0.165
        %v632 = vmul.f32 %v614, 0.165
        %v633 = vsel %vm615, %v606, %v624
        %v634 = vsel %vm616, %v607, %v625
        %v635 = vsel %vm617, %v608, %v626
        %v636 = vsel %vm618, %v609, %v627
        %v637 = vsel %vm619, %v610, %v628
        %v638 = vsel %vm620, %v611, %v629
        %v639 = vsel %vm621, %v612, %v630
        %v640 = vsel %vm622, %v613, %v631
        %v641 = vsel %vm623, %v614, %v632
        %642 = vst [vmem:[%s185] sm:$0xff] %v633
        %643 = vst [vmem:[%s185 + $0x8] sm:$0xff] %v634
        %644 = vst [vmem:[%s185 + $0x10] sm:$0xff] %v635
        %645 = vst [vmem:[%s185 + $0x18] sm:$0xff] %v636
        %646 = vst [vmem:[%s185 + $0x20] sm:$0xff] %v637
        %647 = vst [vmem:[%s185 + $0x28] sm:$0xff] %v638
        %648 = vst [vmem:[%s185 + $0x30] sm:$0xff] %v639
        %649 = vst [vmem:[%s185 + $0x38] sm:$0xff] %v640
        %650 = vst [vmem:[%s185 + $0x40] sm:$0x7] %v641
        %s651 = sld [smem:[#allocation3 + $0x3]]
        %v652 = vstv %s651
        %v653 = vmul.f32 %v233, %v652
        %v654 = vmul.f32 %v234, %v652
        %v655 = vmul.f32 %v235, %v652
        %v656 = vmul.f32 %v236, %v652
        %v657 = vmul.f32 %v237, %v652
        %v658 = vmul.f32 %v238, %v652
        %v659 = vmul.f32 %v239, %v652
        %v660 = vmul.f32 %v240, %v652
        %v661 = vmul.f32 %v241, %v652
        %s662 = sld [smem:[#allocation3 + $0x9]]
        %v663 = vstv %s662
        %v664 = vmul.f32 %v242, %v663
        %v665 = vmul.f32 %v243, %v663
        %v666 = vmul.f32 %v244, %v663
        %v667 = vmul.f32 %v245, %v663
        %v668 = vmul.f32 %v246, %v663
        %v669 = vmul.f32 %v247, %v663
        %v670 = vmul.f32 %v248, %v663
        %v671 = vmul.f32 %v249, %v663
        %v672 = vmul.f32 %v250, %v663
        %v673 = vadd.f32 %v653, %v664
        %v674 = vadd.f32 %v654, %v665
        %v675 = vadd.f32 %v655, %v666
        %v676 = vadd.f32 %v656, %v667
        %v677 = vadd.f32 %v657, %v668
        %v678 = vadd.f32 %v658, %v669
        %v679 = vadd.f32 %v659, %v670
        %v680 = vadd.f32 %v660, %v671
        %v681 = vadd.f32 %v661, %v672
        %s682 = sld [smem:[#allocation3 + $0xf]]
        %v683 = vstv %s682
        %v684 = vmul.f32 %v251, %v683
        %v685 = vmul.f32 %v252, %v683
        %v686 = vmul.f32 %v253, %v683
        %v687 = vmul.f32 %v254, %v683
        %v688 = vmul.f32 %v255, %v683
        %v689 = vmul.f32 %v256, %v683
        %v690 = vmul.f32 %v257, %v683
        %v691 = vmul.f32 %v258, %v683
        %v692 = vmul.f32 %v259, %v683
        %v693 = vadd.f32 %v673, %v684
        %v694 = vadd.f32 %v674, %v685
        %v695 = vadd.f32 %v675, %v686
        %v696 = vadd.f32 %v676, %v687
        %v697 = vadd.f32 %v677, %v688
        %v698 = vadd.f32 %v678, %v689
        %v699 = vadd.f32 %v679, %v690
        %v700 = vadd.f32 %v680, %v691
        %v701 = vadd.f32 %v681, %v692
        %s702 = sld [smem:[#allocation3 + $0x15]]
        %v703 = vstv %s702
        %v704 = vmul.f32 %v260, %v703
        %v705 = vmul.f32 %v261, %v703
        %v706 = vmul.f32 %v262, %v703
        %v707 = vmul.f32 %v263, %v703
        %v708 = vmul.f32 %v264, %v703
        %v709 = vmul.f32 %v265, %v703
        %v710 = vmul.f32 %v266, %v703
        %v711 = vmul.f32 %v267, %v703
        %v712 = vmul.f32 %v268, %v703
        %v713 = vadd.f32 %v693, %v704
        %v714 = vadd.f32 %v694, %v705
        %v715 = vadd.f32 %v695, %v706
        %v716 = vadd.f32 %v696, %v707
        %v717 = vadd.f32 %v697, %v708
        %v718 = vadd.f32 %v698, %v709
        %v719 = vadd.f32 %v699, %v710
        %v720 = vadd.f32 %v700, %v711
        %v721 = vadd.f32 %v701, %v712
        %s722 = sld [smem:[#allocation3 + $0x1b]]
        %v723 = vstv %s722
        %v724 = vmul.f32 %v269, %v723
        %v725 = vmul.f32 %v270, %v723
        %v726 = vmul.f32 %v271, %v723
        %v727 = vmul.f32 %v272, %v723
        %v728 = vmul.f32 %v273, %v723
        %v729 = vmul.f32 %v274, %v723
        %v730 = vmul.f32 %v275, %v723
        %v731 = vmul.f32 %v276, %v723
        %v732 = vmul.f32 %v277, %v723
        %v733 = vadd.f32 %v713, %v724
        %v734 = vadd.f32 %v714, %v725
        %v735 = vadd.f32 %v715, %v726
        %v736 = vadd.f32 %v716, %v727
        %v737 = vadd.f32 %v717, %v728
        %v738 = vadd.f32 %v718, %v729
        %v739 = vadd.f32 %v719, %v730
        %v740 = vadd.f32 %v720, %v731
        %v741 = vadd.f32 %v721, %v732
        %s742 = sld [smem:[#allocation3 + $0x4]]
        %v743 = vstv %s742
        %v744 = vmul.f32 %v233, %v743
        %v745 = vmul.f32 %v234, %v743
        %v746 = vmul.f32 %v235, %v743
        %v747 = vmul.f32 %v236, %v743
        %v748 = vmul.f32 %v237, %v743
        %v749 = vmul.f32 %v238, %v743
        %v750 = vmul.f32 %v239, %v743
        %v751 = vmul.f32 %v240, %v743
        %v752 = vmul.f32 %v241, %v743
        %s753 = sld [smem:[#allocation3 + $0xa]]
        %v754 = vstv %s753
        %v755 = vmul.f32 %v242, %v754
        %v756 = vmul.f32 %v243, %v754
        %v757 = vmul.f32 %v244, %v754
        %v758 = vmul.f32 %v245, %v754
        %v759 = vmul.f32 %v246, %v754
        %v760 = vmul.f32 %v247, %v754
        %v761 = vmul.f32 %v248, %v754
        %v762 = vmul.f32 %v249, %v754
        %v763 = vmul.f32 %v250, %v754
        %v764 = vadd.f32 %v744, %v755
        %v765 = vadd.f32 %v745, %v756
        %v766 = vadd.f32 %v746, %v757
        %v767 = vadd.f32 %v747, %v758
        %v768 = vadd.f32 %v748, %v759
        %v769 = vadd.f32 %v749, %v760
        %v770 = vadd.f32 %v750, %v761
        %v771 = vadd.f32 %v751, %v762
        %v772 = vadd.f32 %v752, %v763
        %s773 = sld [smem:[#allocation3 + $0x10]]
        %v774 = vstv %s773
        %v775 = vmul.f32 %v251, %v774
        %v776 = vmul.f32 %v252, %v774
        %v777 = vmul.f32 %v253, %v774
        %v778 = vmul.f32 %v254, %v774
        %v779 = vmul.f32 %v255, %v774
        %v780 = vmul.f32 %v256, %v774
        %v781 = vmul.f32 %v257, %v774
        %v782 = vmul.f32 %v258, %v774
        %v783 = vmul.f32 %v259, %v774
        %v784 = vadd.f32 %v764, %v775
        %v785 = vadd.f32 %v765, %v776
        %v786 = vadd.f32 %v766, %v777
        %v787 = vadd.f32 %v767, %v778
        %v788 = vadd.f32 %v768, %v779
        %v789 = vadd.f32 %v769, %v780
        %v790 = vadd.f32 %v770, %v781
        %v791 = vadd.f32 %v771, %v782
        %v792 = vadd.f32 %v772, %v783
        %s793 = sld [smem:[#allocation3 + $0x16]]
        %v794 = vstv %s793
        %v795 = vmul.f32 %v260, %v794
        %v796 = vmul.f32 %v261, %v794
        %v797 = vmul.f32 %v262, %v794
        %v798 = vmul.f32 %v263, %v794
        %v799 = vmul.f32 %v264, %v794
        %v800 = vmul.f32 %v265, %v794
        %v801 = vmul.f32 %v266, %v794
        %v802 = vmul.f32 %v267, %v794
        %v803 = vmul.f32 %v268, %v794
        %v804 = vadd.f32 %v784, %v795
        %v805 = vadd.f32 %v785, %v796
        %v806 = vadd.f32 %v786, %v797
        %v807 = vadd.f32 %v787, %v798
        %v808 = vadd.f32 %v788, %v799
        %v809 = vadd.f32 %v789, %v800
        %v810 = vadd.f32 %v790, %v801
        %v811 = vadd.f32 %v791, %v802
        %v812 = vadd.f32 %v792, %v803
        %s813 = sld [smem:[#allocation3 + $0x1c]]
        %v814 = vstv %s813
        %v815 = vmul.f32 %v269, %v814
        %v816 = vmul.f32 %v270, %v814
        %v817 = vmul.f32 %v271, %v814
        %v818 = vmul.f32 %v272, %v814
        %v819 = vmul.f32 %v273, %v814
        %v820 = vmul.f32 %v274, %v814
        %v821 = vmul.f32 %v275, %v814
        %v822 = vmul.f32 %v276, %v814
        %v823 = vmul.f32 %v277, %v814
        %v824 = vadd.f32 %v804, %v815
        %v825 = vadd.f32 %v805, %v816
        %v826 = vadd.f32 %v806, %v817
        %v827 = vadd.f32 %v807, %v818
        %v828 = vadd.f32 %v808, %v819
        %v829 = vadd.f32 %v809, %v820
        %v830 = vadd.f32 %v810, %v821
        %v831 = vadd.f32 %v811, %v822
        %v832 = vadd.f32 %v812, %v823
        %833 = vrot.lane.b32.xlu0 %v824, 1
        %v834 = vpop.permute.xlu0 %833
        %835 = vrot.lane.b32.xlu0 %v825, 1
        %v836 = vpop.permute.xlu0 %835
        %837 = vrot.lane.b32.xlu0 %v826, 1
        %v838 = vpop.permute.xlu0 %837
        %839 = vrot.lane.b32.xlu0 %v827, 1
        %v840 = vpop.permute.xlu0 %839
        %841 = vrot.lane.b32.xlu0 %v828, 1
        %v842 = vpop.permute.xlu0 %841
        %843 = vrot.lane.b32.xlu0 %v829, 1
        %v844 = vpop.permute.xlu0 %843
        %845 = vrot.lane.b32.xlu0 %v830, 1
        %v846 = vpop.permute.xlu0 %845
        %847 = vrot.lane.b32.xlu0 %v831, 1
        %v848 = vpop.permute.xlu0 %847
        %849 = vrot.lane.b32.xlu0 %v832, 1
        %v850 = vpop.permute.xlu0 %849
        %v851 = vadd.f32 %v733, %v834
        %v852 = vadd.f32 %v734, %v836
        %v853 = vadd.f32 %v735, %v838
        %v854 = vadd.f32 %v736, %v840
        %v855 = vadd.f32 %v737, %v842
        %v856 = vadd.f32 %v738, %v844
        %v857 = vadd.f32 %v739, %v846
        %v858 = vadd.f32 %v740, %v848
        %v859 = vadd.f32 %v741, %v850
        %s860 = sld [smem:[#allocation3 + $0x5]]
        %v861 = vstv %s860
        %v862 = vmul.f32 %v233, %v861
        %v863 = vmul.f32 %v234, %v861
        %v864 = vmul.f32 %v235, %v861
        %v865 = vmul.f32 %v236, %v861
        %v866 = vmul.f32 %v237, %v861
        %v867 = vmul.f32 %v238, %v861
        %v868 = vmul.f32 %v239, %v861
        %v869 = vmul.f32 %v240, %v861
        %v870 = vmul.f32 %v241, %v861
        %s871 = sld [smem:[#allocation3 + $0xb]]
        %v872 = vstv %s871
        %v873 = vmul.f32 %v242, %v872
        %v874 = vmul.f32 %v243, %v872
        %v875 = vmul.f32 %v244, %v872
        %v876 = vmul.f32 %v245, %v872
        %v877 = vmul.f32 %v246, %v872
        %v878 = vmul.f32 %v247, %v872
        %v879 = vmul.f32 %v248, %v872
        %v880 = vmul.f32 %v249, %v872
        %v881 = vmul.f32 %v250, %v872
        %v882 = vadd.f32 %v862, %v873
        %v883 = vadd.f32 %v863, %v874
        %v884 = vadd.f32 %v864, %v875
        %v885 = vadd.f32 %v865, %v876
        %v886 = vadd.f32 %v866, %v877
        %v887 = vadd.f32 %v867, %v878
        %v888 = vadd.f32 %v868, %v879
        %v889 = vadd.f32 %v869, %v880
        %v890 = vadd.f32 %v870, %v881
        %s891 = sld [smem:[#allocation3 + $0x11]]
        %v892 = vstv %s891
        %v893 = vmul.f32 %v251, %v892
        %v894 = vmul.f32 %v252, %v892
        %v895 = vmul.f32 %v253, %v892
        %v896 = vmul.f32 %v254, %v892
        %v897 = vmul.f32 %v255, %v892
        %v898 = vmul.f32 %v256, %v892
        %v899 = vmul.f32 %v257, %v892
        %v900 = vmul.f32 %v258, %v892
        %v901 = vmul.f32 %v259, %v892
        %v902 = vadd.f32 %v882, %v893
        %v903 = vadd.f32 %v883, %v894
        %v904 = vadd.f32 %v884, %v895
        %v905 = vadd.f32 %v885, %v896
        %v906 = vadd.f32 %v886, %v897
        %v907 = vadd.f32 %v887, %v898
        %v908 = vadd.f32 %v888, %v899
        %v909 = vadd.f32 %v889, %v900
        %v910 = vadd.f32 %v890, %v901
        %s911 = sld [smem:[#allocation3 + $0x17]]
        %v912 = vstv %s911
        %v913 = vmul.f32 %v260, %v912
        %v914 = vmul.f32 %v261, %v912
        %v915 = vmul.f32 %v262, %v912
        %v916 = vmul.f32 %v263, %v912
        %v917 = vmul.f32 %v264, %v912
        %v918 = vmul.f32 %v265, %v912
        %v919 = vmul.f32 %v266, %v912
        %v920 = vmul.f32 %v267, %v912
        %v921 = vmul.f32 %v268, %v912
        %v922 = vadd.f32 %v902, %v913
        %v923 = vadd.f32 %v903, %v914
        %v924 = vadd.f32 %v904, %v915
        %v925 = vadd.f32 %v905, %v916
        %v926 = vadd.f32 %v906, %v917
        %v927 = vadd.f32 %v907, %v918
        %v928 = vadd.f32 %v908, %v919
        %v929 = vadd.f32 %v909, %v920
        %v930 = vadd.f32 %v910, %v921
        %s931 = sld [smem:[#allocation3 + $0x1d]]
        %v932 = vstv %s931
        %v933 = vmul.f32 %v269, %v932
        %v934 = vmul.f32 %v270, %v932
        %v935 = vmul.f32 %v271, %v932
        %v936 = vmul.f32 %v272, %v932
        %v937 = vmul.f32 %v273, %v932
        %v938 = vmul.f32 %v274, %v932
        %v939 = vmul.f32 %v275, %v932
        %v940 = vmul.f32 %v276, %v932
        %v941 = vmul.f32 %v277, %v932
        %v942 = vadd.f32 %v922, %v933
        %v943 = vadd.f32 %v923, %v934
        %v944 = vadd.f32 %v924, %v935
        %v945 = vadd.f32 %v925, %v936
        %v946 = vadd.f32 %v926, %v937
        %v947 = vadd.f32 %v927, %v938
        %v948 = vadd.f32 %v928, %v939
        %v949 = vadd.f32 %v929, %v940
        %v950 = vadd.f32 %v930, %v941
        %951 = vrot.lane.b32.xlu0 %v942, 2
        %v952 = vpop.permute.xlu0 %951
        %953 = vrot.lane.b32.xlu0 %v943, 2
        %v954 = vpop.permute.xlu0 %953
        %955 = vrot.lane.b32.xlu0 %v944, 2
        %v956 = vpop.permute.xlu0 %955
        %957 = vrot.lane.b32.xlu0 %v945, 2
        %v958 = vpop.permute.xlu0 %957
        %959 = vrot.lane.b32.xlu0 %v946, 2
        %v960 = vpop.permute.xlu0 %959
        %961 = vrot.lane.b32.xlu0 %v947, 2
        %v962 = vpop.permute.xlu0 %961
        %963 = vrot.lane.b32.xlu0 %v948, 2
        %v964 = vpop.permute.xlu0 %963
        %965 = vrot.lane.b32.xlu0 %v949, 2
        %v966 = vpop.permute.xlu0 %965
        %967 = vrot.lane.b32.xlu0 %v950, 2
        %v968 = vpop.permute.xlu0 %967
        %v969 = vadd.f32 %v851, %v952
        %v970 = vadd.f32 %v852, %v954
        %v971 = vadd.f32 %v853, %v956
        %v972 = vadd.f32 %v854, %v958
        %v973 = vadd.f32 %v855, %v960
        %v974 = vadd.f32 %v856, %v962
        %v975 = vadd.f32 %v857, %v964
        %v976 = vadd.f32 %v858, %v966
        %v977 = vadd.f32 %v859, %v968
        %v978 = vadd.f32 %v969, %v605
        %v979 = vadd.f32 %v970, %v605
        %v980 = vadd.f32 %v971, %v605
        %v981 = vadd.f32 %v972, %v605
        %v982 = vadd.f32 %v973, %v605
        %v983 = vadd.f32 %v974, %v605
        %v984 = vadd.f32 %v975, %v605
        %v985 = vadd.f32 %v976, %v605
        %v986 = vadd.f32 %v977, %v605
        %vm987 = vcmp.gt.f32.partialorder %v978, 0.0
        %vm988 = vcmp.gt.f32.partialorder %v979, 0.0
        %vm989 = vcmp.gt.f32.partialorder %v980, 0.0
        %vm990 = vcmp.gt.f32.partialorder %v981, 0.0
        %vm991 = vcmp.gt.f32.partialorder %v982, 0.0
        %vm992 = vcmp.gt.f32.partialorder %v983, 0.0
        %vm993 = vcmp.gt.f32.partialorder %v984, 0.0
        %vm994 = vcmp.gt.f32.partialorder %v985, 0.0
        %vm995 = vcmp.gt.f32.partialorder %v986, 0.0
        %v996 = vmul.f32 %v978, 0.165
        %v997 = vmul.f32 %v979, 0.165
        %v998 = vmul.f32 %v980, 0.165
        %v999 = vmul.f32 %v981, 0.165
        %v1000 = vmul.f32 %v982, 0.165
        %v1001 = vmul.f32 %v983, 0.165
        %v1002 = vmul.f32 %v984, 0.165
        %v1003 = vmul.f32 %v985, 0.165
        %v1004 = vmul.f32 %v986, 0.165
        %v1005 = vsel %vm987, %v978, %v996
        %v1006 = vsel %vm988, %v979, %v997
        %v1007 = vsel %vm989, %v980, %v998
        %v1008 = vsel %vm990, %v981, %v999
        %v1009 = vsel %vm991, %v982, %v1000
        %v1010 = vsel %vm992, %v983, %v1001
        %v1011 = vsel %vm993, %v984, %v1002
        %v1012 = vsel %vm994, %v985, %v1003
        %v1013 = vsel %vm995, %v986, %v1004
        %s1014 = scalar_lea.vmem %s185, 72
        %1015 = vst [vmem:[%s1014] sm:$0xff] %v1005
        %1016 = vst [vmem:[%s1014 + $0x8] sm:$0xff] %v1006
        %1017 = vst [vmem:[%s1014 + $0x10] sm:$0xff] %v1007
        %1018 = vst [vmem:[%s1014 + $0x18] sm:$0xff] %v1008
        %1019 = vst [vmem:[%s1014 + $0x20] sm:$0xff] %v1009
        %1020 = vst [vmem:[%s1014 + $0x28] sm:$0xff] %v1010
        %1021 = vst [vmem:[%s1014 + $0x30] sm:$0xff] %v1011
        %1022 = vst [vmem:[%s1014 + $0x38] sm:$0xff] %v1012
        %1023 = vst [vmem:[%s1014 + $0x40] sm:$0x7] %v1013
        %p1024 = scmp.lt.s32.totalorder %s16, 1
        %s1025 = scalar_select %p1024, %s16, 1
        %s1026 = smul.addr %s1025, 18
        %s1027 = smul.addr %s1026, 8
        %s1028 = scalar_lea.vmem %s3, %s1027
        // Predicated region
        $region37: #{tpu_custom_call.1} parent=31 // pred_check
          %p1029 = pneg %p102
        $region38: #{tpu_custom_call.1} parent=31 // pred_check_branch
          %1031 = sbr.rel (%p1029) target = $region40
        $region39: #{tpu_custom_call.1} parent=31 // pred_region
          _
        $region40: #{tpu_custom_call.1} parent=31 // pred_fallthru
          _
      $region32: #{tpu_custom_call.1} parent=5 // pred_fallthru
        _
      %p1032 = scmp.le.s32.totalorder 2, %s11
      // Predicated region
      $region41: #{tpu_custom_call.1} parent=5 // pred_check
        %p1033 = pneg %p1032
      $region42: #{tpu_custom_call.1} parent=5 // pred_check_branch
        %1035 = sbr.rel (%p1033) target = $region44
      $region43: #{tpu_custom_call.1} parent=5 // pred_region
        %s1036 = ssub.s32 %s11, 2
        // Predicated region
        $region45: #{tpu_custom_call.1} parent=43 // pred_check
          %p1037 = pneg %p108
        $region46: #{tpu_custom_call.1} parent=43 // pred_check_branch
          %1039 = sbr.rel (%p1037) target = $region48
        $region47: #{tpu_custom_call.1} parent=43 // pred_region
          %p1040 = scmp.lt.s32.totalorder %s17, 1
          %s1041 = scalar_select %p1040, %s17, 1
          %s1042 = smul.addr %s1041, 18
          %s1043 = smul.addr %s1042, 8
          %s1044 = scalar_lea.vmem %s3, %s1043
        $region48: #{tpu_custom_call.1} parent=43 // pred_fallthru
          _
      $region44: #{tpu_custom_call.1} parent=5 // pred_fallthru
        _
    $region6: #{tpu_custom_call.1} parent=1 // loop_footer
      %s15 = sadd.s32 1, %s11
    $region7: #{tpu_custom_call.1} parent=1 // loop_footer_branch
      %10 = sbr.rel target = $region3
    $region8: #{tpu_custom_call.1} parent=1 // loop_exit
      _
    %1045 = vsyncpa [#allocation4], 1
    %s1046 = scalar_lea.sflag [#allocation4], 1
    %1047 = vsyncpa %s1046, 1

</llo_original>
